<compile_context>
chip_gen: v7x
topology: tpu7x:2x2x1
jax: 0.10.0
libtpu: 0.0.40
codegen_flags: <defaults>
</compile_context>

<pallas_src>
import functools

import jax
import jax.numpy as jnp
from jax.experimental import pallas as pl
from jax.experimental.pallas import tpu as pltpu


def _pair(v):
    if isinstance(v, (tuple, list)):
        a, b = v
        return int(a), int(b)
    return int(v), int(v)


def _round_up(v, m):
    return ((v + m - 1) // m) * m


def _vmem_budget():
    """(per-step block budget, vmem_limit_bytes) tuned to this generation."""
    try:
        cap = getattr(pltpu.get_tpu_info(), "vmem_capacity_bytes", None)
    except Exception:  # query unavailable -> be conservative
        cap = None
    if cap is not None and cap >= 128 * 1024 * 1024:      # v5e / v6e (128 MiB)
        return 24 * 1024 * 1024, 64 * 1024 * 1024
    return 8 * 1024 * 1024, 32 * 1024 * 1024              # v7x (64 MiB) / unknown


def _pick_c_blk(c, per_channel_bytes, *, sublane, budget_bytes, max_cb=None):
    """Largest sublane-friendly divisor of c whose tiles fit the VMEM budget."""
    cands = [cb for cb in range(1, c + 1)
             if c % cb == 0 and (cb == c or cb % sublane == 0)]
    if max_cb is not None:
        capped = [cb for cb in cands if cb <= max_cb]
        if capped:                       # soft cap (v7x: keep >= 2 grid steps)
            cands = capped
    fitting = [cb for cb in cands if cb * per_channel_bytes <= budget_bytes]
    if fitting:
        return max(fitting)
    return min(cands)                    # best effort: smallest valid block


# ---------------------------------------------------------------------------
# Fast path: stride == 1 and out_w == W ("same"-style config this module is
# actually used with).  Every unfold tap (ki, kj) is a static lane shift of
# the flattened image; boundary columns are masked with hoisted iota masks.
# Input, scratch and output tiles are all lane-dense; every tap store is a
# dense (c_blk, L) slab into a flat output block.
# ---------------------------------------------------------------------------
def _im2col_same_kernel(x_ref, out_ref, fs_ref, *, kh, kw, ph, pw, h, w,
                        out_h, off):
    # x_ref  : (1, c_blk, h*w)            flattened input tile
    # out_ref: (1, c_blk, kh*kw*out_h*w)  flat unfold output tile (lane-dense)
    # fs_ref : (c_blk, scratch_len)       zero-margined flat copy of the tile
    c_blk = x_ref.shape[1]
    l_in = h * w
    l_out = out_h * w
    scratch_len = fs_ref.shape[1]

    # Zero only the margins (interior is overwritten by the aligned copy).
    if off:
        fs_ref[:, :off] = jnp.zeros((c_blk, off), fs_ref.dtype)
    if scratch_len > off + l_in:
        fs_ref[:, off + l_in:] = jnp.zeros(
            (c_blk, scratch_len - off - l_in), fs_ref.dtype)
    # off is a multiple of 128 -> dense, lane-aligned store of the whole image.
    fs_ref[:, off:off + l_in] = x_ref[0]

    # Boundary masks hoisted out of the tap loops: only kw distinct shifts.
    col = jax.lax.broadcasted_iota(jnp.int32, (c_blk, l_out), 1) % w
    masks = {}
    for dc in range(-pw, kw - pw):
        if dc > 0:
            masks[dc] = col < (w - dc)
        elif dc < 0:
            masks[dc] = col >= (-dc)

    for ki in range(kh):
        for kj in range(kw):
            t = ki * kw + kj
            dc = kj - pw
            start = off + (ki - ph) * w + dc       # static lane shift
            shifted = fs_ref[:, start:start + l_out]
            patch = jnp.where(masks[dc], shifted, 0) if dc else shifted
            # Dense, lane-contiguous store (no sublane masking).
            out_ref[0, :, t * l_out:(t + 1) * l_out] = patch.astype(out_ref.dtype)


# ---------------------------------------------------------------------------
# General path (any stride / padding).  The zero-padded image is kept as a
# row-major flat scratch; each tap reads one contiguous segment and maps it to
# the output positions with a single 0/1 selection matmul on the MXU
# (channels batched into the M dim).  Output is a flat lane-dense slab.
# ---------------------------------------------------------------------------
def _im2col_general_kernel(x_ref, out_ref, fs_ref, *, kh, kw, sh, sw, ph, pw,
                           h, w, out_h, out_w, wp, seg_len):
    # x_ref  : (1, c_blk, h, w)
    # out_ref: (1, c_blk, kh*kw*out_h*out_w)   flat, lane-dense
    # fs_ref : (c_blk, >= hp*wp)  row-major flattened zero-padded image
    c_blk = x_ref.shape[1]
    L = out_h * out_w

    # Padding margins are interleaved in the flat layout -> zero everything,
    # then drop each image row into place.
    fs_ref[...] = jnp.zeros_like(fs_ref)
    for r in range(h):
        base = (ph + r) * wp + pw
        fs_ref[:, base:base + w] = x_ref[0, :, r, :]

    # One 0/1 selection matrix shared by every tap:
    # sel[p, q] == 1 iff segment offset p is output position q's source pixel.
    p_iota = jax.lax.broadcasted_iota(jnp.int32, (seg_len, L), 0)
    q_iota = jax.lax.broadcasted_iota(jnp.int32, (seg_len, L), 1)
    target = (q_iota // out_w) * (sh * wp) + (q_iota % out_w) * sw
    sel = (p_iota == target).astype(jnp.float32)

    for ki in range(kh):
        for kj in range(kw):
            t = ki * kw + kj
            base = ki * wp + kj
            seg = fs_ref[:, base:base + seg_len].astype(jnp.float32)
            # (c_blk, seg_len) @ (seg_len, L): exact 0/1 selection on the MXU.
            patch = jnp.dot(seg, sel, preferred_element_type=jnp.float32)
            out_ref[0, :, t * L:(t + 1) * L] = patch.astype(out_ref.dtype)


def im2col(x, kernel_size, stride, padding):
    """Pallas TPU equivalent of the PyTorch Im2col module's forward."""
    kh, kw = _pair(kernel_size)
    sh, sw = _pair(stride)
    ph, pw = _pair(padding)
    b, c, h, w = x.shape
    out_h = (h + 2 * ph - kh) // sh + 1
    out_w = (w + 2 * pw - kw) // sw + 1
    L = out_h * out_w
    itemsize = jnp.dtype(x.dtype).itemsize
    sublane = max(8, 32 // max(1, itemsize))       # dtype-aware sublane tiling

    budget_bytes, vmem_limit = _vmem_budget()
    # v7x has 2 TensorCores: guarantee >= 2 "parallel" grid steps when b == 1.
    max_cb = (c // 2) if (b == 1 and c > 1) else None

    use_fast = (sh == 1 and sw == 1 and out_w == w)

    if use_fast:
        l_in, l_out = h * w, out_h * w
        m_lo = ph * w + pw
        off = _round_up(m_lo, 128)                 # lane-aligned scratch copy
        d_max = (kh - 1 - ph) * w + (kw - 1 - pw)
        scratch_len = _round_up(max(off + l_in, off + d_max + l_out), 128)
        per_c = itemsize * (
            2 * _round_up(l_in, 128)                       # input  (2 bufs)
            + 2 * _round_up(kh * kw * l_out, 128)          # output (2 bufs)
            + scratch_len)                                 # scratch
        c_blk = _pick_c_blk(c, per_c, sublane=sublane,
                            budget_bytes=budget_bytes, max_cb=max_cb)
        vmem_limit = max(vmem_limit, c_blk * per_c + (8 << 20))

        kernel = functools.partial(
            _im2col_same_kernel, kh=kh, kw=kw, ph=ph, pw=pw, h=h, w=w,
            out_h=out_h, off=off)
        out = pl.pallas_call(
            kernel,
            out_shape=jax.ShapeDtypeStruct((b, c, kh * kw * l_out), x.dtype),
            grid_spec=pltpu.PrefetchScalarGridSpec(
                num_scalar_prefetch=0,
                grid=(b, c // c_blk),
                in_specs=[pl.BlockSpec((1, c_blk, l_in),
                                       lambda bi, ci: (bi, ci, 0))],
                out_specs=pl.BlockSpec((1, c_blk, kh * kw * l_out),
                                       lambda bi, ci: (bi, ci, 0)),
                scratch_shapes=[pltpu.VMEM((c_blk, scratch_len), x.dtype)],
            ),
            compiler_params=pltpu.CompilerParams(
                dimension_semantics=("parallel", "parallel"),
                vmem_limit_bytes=int(vmem_limit)),
        )(x.reshape(b, c, h * w))      # metadata-only reshape for NCHW input
    else:
        hp, wp = h + 2 * ph, w + 2 * pw
        flat_len = _round_up(hp * wp, 128)
        seg_len = (out_h - 1) * sh * wp + (out_w - 1) * sw + 1
        per_c = itemsize * (
            2 * _round_up(h, 8) * _round_up(w, 128)
            + 2 * _round_up(kh * kw * L, 128)
            + flat_len)
        c_blk = _pick_c_blk(c, per_c, sublane=sublane,
                            budget_bytes=budget_bytes, max_cb=max_cb)
        vmem_limit = max(vmem_limit, c_blk * per_c + seg_len * L * 4 + (8 << 20))

        kernel = functools.partial(
            _im2col_general_kernel, kh=kh, kw=kw, sh=sh, sw=sw, ph=ph, pw=pw,
            h=h, w=w, out_h=out_h, out_w=out_w, wp=wp, seg_len=seg_len)
        out = pl.pallas_call(
            kernel,
            out_shape=jax.ShapeDtypeStruct((b, c, kh * kw * L), x.dtype),
            grid_spec=pltpu.PrefetchScalarGridSpec(
                num_scalar_prefetch=0,
                grid=(b, c // c_blk),
                in_specs=[pl.BlockSpec((1, c_blk, h, w),
                                       lambda bi, ci: (bi, ci, 0, 0))],
                out_specs=pl.BlockSpec((1, c_blk, kh * kw * L),
                                       lambda bi, ci: (bi, ci, 0)),
                scratch_shapes=[pltpu.VMEM((c_blk, flat_len), x.dtype)],
            ),
            compiler_params=pltpu.CompilerParams(
                dimension_semantics=("parallel", "parallel"),
                vmem_limit_bytes=int(vmem_limit)),
        )(x)

    # torch.nn.functional.unfold channel order is (c, ki, kj); both reshapes
    # below are free metadata ops (HBM layout is already correct).
    assert L % h == 0, "module reshape requires unfold length divisible by H"
    out = out.reshape(b, c * kh * kw, L)
    return out.reshape(b, c * kh * kw, h, -1)


def _reference(x, kernel_size, stride, padding):
    """Pure-JAX reference (mirrors F.unfold + the module's reshape)."""
    kh, kw = _pair(kernel_size)
    sh, sw = _pair(stride)
    ph, pw = _pair(padding)
    b, c, h, w = x.shape
    out_h = (h + 2 * ph - kh) // sh + 1
    out_w = (w + 2 * pw - kw) // sw + 1
    xp = jnp.pad(x, ((0, 0), (0, 0), (ph, ph), (pw, pw)))
    cols = []
    for ki in range(kh):
        for kj in range(kw):
            cols.append(xp[:, :,
                           ki:ki + sh * out_h:sh,
                           kj:kj + sw * out_w:sw])
    ref = jnp.stack(cols, axis=2).reshape(b, c * kh * kw, out_h * out_w)
    return ref.reshape(b, c * kh * kw, h, -1)


if __name__ == "__main__":
    key = jax.random.PRNGKey(0)
    x = jax.random.normal(key, (2, 4, 16, 16), dtype=jnp.float32)

    # Module's config (3x3, stride 1, pad 1): lane-dense flat-shift fast path.
    y1 = jax.block_until_ready(im2col(x, 3, 1, 1))
    r1 = _reference(x, 3, 1, 1)
    assert y1.shape == (2, 36, 16, 16), y1.shape
    assert jnp.allclose(y1, r1), "stride=1 mismatch vs reference"

    # stride=2: exercises the general path (batched MXU 0/1-selection).
    y2 = jax.block_until_ready(im2col(x, 3, 2, 1))
    r2 = _reference(x, 3, 2, 1)
    assert y2.shape == (2, 36, 16, 4), y2.shape
    assert jnp.allclose(y2, r2), "stride=2 mismatch vs reference"

    print("KERNEL_OK")
</pallas_src>

<mosaic_0001>
module attributes {stable_mosaic.version = 11 : i64} {
  func.func @_im2col_same_kernel(%arg0: i32, %arg1: i32, %arg2: memref<1x4x256xf32, #tpu.memory_space<vmem>>, %arg3: memref<1x4x2304xf32, #tpu.memory_space<vmem>>, %arg4: memref<4x512xf32, #tpu.memory_space<vmem>>) attributes {dimension_semantics = [#tpu.dimension_semantics<parallel>, #tpu.dimension_semantics<parallel>], iteration_bounds = array<i64: 2, 1>, scalar_prefetch = 0 : i64, scratch_operands = 1 : i64, tpu.core_type = #tpu.core_type<tc>, window_params = [{transform_indices = @transform_0, window_bounds = array<i64: 1, 4, 256>}, {transform_indices = @transform_1, window_bounds = array<i64: 1, 4, 2304>}]} {
    %cst = arith.constant 0.000000e+00 : f32
    %0 = vector.broadcast %cst : f32 to vector<4x128xf32>
    %c0 = arith.constant 0 : index
    %c0_0 = arith.constant 0 : index
    %1 = vector.load %arg4[%c0, %c0_0] : memref<4x512xf32, #tpu.memory_space<vmem>>, vector<4x128xf32>
    tpu.vector_store %arg4[%c0, %c0_0], %0 {strides = array<i32>} : memref<4x512xf32, #tpu.memory_space<vmem>>, vector<4x128xf32>,
    %cst_1 = arith.constant 0.000000e+00 : f32
    %2 = vector.broadcast %cst_1 : f32 to vector<4x128xf32>
    %c0_2 = arith.constant 0 : index
    %c384 = arith.constant 384 : index
    %3 = vector.load %arg4[%c0_2, %c384] : memref<4x512xf32, #tpu.memory_space<vmem>>, vector<4x128xf32>
    tpu.vector_store %arg4[%c0_2, %c384], %2 {strides = array<i32>} : memref<4x512xf32, #tpu.memory_space<vmem>>, vector<4x128xf32>,
    %c0_3 = arith.constant 0 : index
    %c0_4 = arith.constant 0 : index
    %c0_5 = arith.constant 0 : index
    %4 = vector.load %arg2[%c0_3, %c0_4, %c0_5] : memref<1x4x256xf32, #tpu.memory_space<vmem>>, vector<1x4x256xf32>
    %5 = vector.shape_cast %4 : vector<1x4x256xf32> to vector<4x256xf32>
    %c0_6 = arith.constant 0 : index
    %c128 = arith.constant 128 : index
    %6 = vector.load %arg4[%c0_6, %c128] : memref<4x512xf32, #tpu.memory_space<vmem>>, vector<4x256xf32>
    tpu.vector_store %arg4[%c0_6, %c128], %5 {strides = array<i32>} : memref<4x512xf32, #tpu.memory_space<vmem>>, vector<4x256xf32>,
    %7 = tpu.iota {dimensions = array<i32: 1>} : vector<4x256xi32>
    %c16_i32 = arith.constant 16 : i32
    %c0_i32 = arith.constant 0 : i32
    %8 = arith.cmpi eq, %c16_i32, %c0_i32 : i32
    %c1_i32 = arith.constant 1 : i32
    %9 = arith.select %8, %c1_i32, %c16_i32 : i32
    %10 = vector.broadcast %9 : i32 to vector<4x256xi32>
    %11 = arith.remsi %7, %10 : vector<4x256xi32>
    %c0_i32_7 = arith.constant 0 : i32
    %12 = vector.broadcast %c0_i32_7 : i32 to vector<4x256xi32>
    %13 = arith.cmpi ne, %11, %12 : vector<4x256xi32>
    %c0_i32_8 = arith.constant 0 : i32
    %14 = vector.broadcast %c0_i32_8 : i32 to vector<4x256xi32>
    %15 = arith.cmpi slt, %11, %14 : vector<4x256xi32>
    %c0_i32_9 = arith.constant 0 : i32
    %16 = arith.cmpi slt, %9, %c0_i32_9 : i32
    %17 = vector.broadcast %16 : i1 to vector<4x256xi1>
    %18 = vector.broadcast %17 : vector<4x256xi1> to vector<4x256xi1>
    %19 = arith.xori %15, %18 : vector<4x256xi1>
    %20 = arith.andi %19, %13 : vector<4x256xi1>
    %21 = vector.broadcast %9 : i32 to vector<4x256xi32>
    %22 = arith.addi %11, %21 : vector<4x256xi32>
    %23 = arith.select %20, %22, %11 : vector<4x256xi1>, vector<4x256xi32>
    %c1_i32_10 = arith.constant 1 : i32
    %24 = vector.broadcast %c1_i32_10 : i32 to vector<4x256xi32>
    %25 = arith.cmpi sge, %23, %24 : vector<4x256xi32>
    %c15_i32 = arith.constant 15 : i32
    %26 = vector.broadcast %c15_i32 : i32 to vector<4x256xi32>
    %27 = arith.cmpi slt, %23, %26 : vector<4x256xi32>
    %c0_11 = arith.constant 0 : index
    %c111 = arith.constant 111 : index
    %28 = vector.load %arg4[%c0_11, %c111] : memref<4x512xf32, #tpu.memory_space<vmem>>, vector<4x256xf32>
    %c0_i32_12 = arith.constant 0 : i32
    %29 = arith.sitofp %c0_i32_12 : i32 to f32
    %30 = vector.broadcast %29 : f32 to vector<4x256xf32>
    %31 = arith.select %25, %28, %30 : vector<4x256xi1>, vector<4x256xf32>
    %c0_13 = arith.constant 0 : index
    %c0_14 = arith.constant 0 : index
    %c0_15 = arith.constant 0 : index
    %32 = vector.load %arg3[%c0_13, %c0_14, %c0_15] : memref<1x4x2304xf32, #tpu.memory_space<vmem>>, vector<1x4x256xf32>
    %33 = vector.shape_cast %32 : vector<1x4x256xf32> to vector<4x256xf32>
    %34 = vector.shape_cast %31 : vector<4x256xf32> to vector<1x4x256xf32>
    tpu.vector_store %arg3[%c0_13, %c0_14, %c0_15], %34 {strides = array<i32>} : memref<1x4x2304xf32, #tpu.memory_space<vmem>>, vector<1x4x256xf32>,
    %c0_16 = arith.constant 0 : index
    %c112 = arith.constant 112 : index
    %35 = vector.load %arg4[%c0_16, %c112] : memref<4x512xf32, #tpu.memory_space<vmem>>, vector<4x256xf32>
    %c0_17 = arith.constant 0 : index
    %c0_18 = arith.constant 0 : index
    %c256 = arith.constant 256 : index
    %36 = vector.load %arg3[%c0_17, %c0_18, %c256] : memref<1x4x2304xf32, #tpu.memory_space<vmem>>, vector<1x4x256xf32>
    %37 = vector.shape_cast %36 : vector<1x4x256xf32> to vector<4x256xf32>
    %38 = vector.shape_cast %35 : vector<4x256xf32> to vector<1x4x256xf32>
    tpu.vector_store %arg3[%c0_17, %c0_18, %c256], %38 {strides = array<i32>} : memref<1x4x2304xf32, #tpu.memory_space<vmem>>, vector<1x4x256xf32>,
    %c0_19 = arith.constant 0 : index
    %c113 = arith.constant 113 : index
    %39 = vector.load %arg4[%c0_19, %c113] : memref<4x512xf32, #tpu.memory_space<vmem>>, vector<4x256xf32>
    %c0_i32_20 = arith.constant 0 : i32
    %40 = arith.sitofp %c0_i32_20 : i32 to f32
    %41 = vector.broadcast %40 : f32 to vector<4x256xf32>
    %42 = arith.select %27, %39, %41 : vector<4x256xi1>, vector<4x256xf32>
    %c0_21 = arith.constant 0 : index
    %c0_22 = arith.constant 0 : index
    %c512 = arith.constant 512 : index
    %43 = vector.load %arg3[%c0_21, %c0_22, %c512] : memref<1x4x2304xf32, #tpu.memory_space<vmem>>, vector<1x4x256xf32>
    %44 = vector.shape_cast %43 : vector<1x4x256xf32> to vector<4x256xf32>
    %45 = vector.shape_cast %42 : vector<4x256xf32> to vector<1x4x256xf32>
    tpu.vector_store %arg3[%c0_21, %c0_22, %c512], %45 {strides = array<i32>} : memref<1x4x2304xf32, #tpu.memory_space<vmem>>, vector<1x4x256xf32>,
    %c0_23 = arith.constant 0 : index
    %c127 = arith.constant 127 : index
    %46 = vector.load %arg4[%c0_23, %c127] : memref<4x512xf32, #tpu.memory_space<vmem>>, vector<4x256xf32>
    %c0_i32_24 = arith.constant 0 : i32
    %47 = arith.sitofp %c0_i32_24 : i32 to f32
    %48 = vector.broadcast %47 : f32 to vector<4x256xf32>
    %49 = arith.select %25, %46, %48 : vector<4x256xi1>, vector<4x256xf32>
    %c0_25 = arith.constant 0 : index
    %c0_26 = arith.constant 0 : index
    %c768 = arith.constant 768 : index
    %50 = vector.load %arg3[%c0_25, %c0_26, %c768] : memref<1x4x2304xf32, #tpu.memory_space<vmem>>, vector<1x4x256xf32>
    %51 = vector.shape_cast %50 : vector<1x4x256xf32> to vector<4x256xf32>
    %52 = vector.shape_cast %49 : vector<4x256xf32> to vector<1x4x256xf32>
    tpu.vector_store %arg3[%c0_25, %c0_26, %c768], %52 {strides = array<i32>} : memref<1x4x2304xf32, #tpu.memory_space<vmem>>, vector<1x4x256xf32>,
    %c0_27 = arith.constant 0 : index
    %c128_28 = arith.constant 128 : index
    %53 = vector.load %arg4[%c0_27, %c128_28] : memref<4x512xf32, #tpu.memory_space<vmem>>, vector<4x256xf32>
    %c0_29 = arith.constant 0 : index
    %c0_30 = arith.constant 0 : index
    %c1024 = arith.constant 1024 : index
    %54 = vector.load %arg3[%c0_29, %c0_30, %c1024] : memref<1x4x2304xf32, #tpu.memory_space<vmem>>, vector<1x4x256xf32>
    %55 = vector.shape_cast %54 : vector<1x4x256xf32> to vector<4x256xf32>
    %56 = vector.shape_cast %53 : vector<4x256xf32> to vector<1x4x256xf32>
    tpu.vector_store %arg3[%c0_29, %c0_30, %c1024], %56 {strides = array<i32>} : memref<1x4x2304xf32, #tpu.memory_space<vmem>>, vector<1x4x256xf32>,
    %c0_31 = arith.constant 0 : index
    %c129 = arith.constant 129 : index
    %57 = vector.load %arg4[%c0_31, %c129] : memref<4x512xf32, #tpu.memory_space<vmem>>, vector<4x256xf32>
    %c0_i32_32 = arith.constant 0 : i32
    %58 = arith.sitofp %c0_i32_32 : i32 to f32
    %59 = vector.broadcast %58 : f32 to vector<4x256xf32>
    %60 = arith.select %27, %57, %59 : vector<4x256xi1>, vector<4x256xf32>
    %c0_33 = arith.constant 0 : index
    %c0_34 = arith.constant 0 : index
    %c1280 = arith.constant 1280 : index
    %61 = vector.load %arg3[%c0_33, %c0_34, %c1280] : memref<1x4x2304xf32, #tpu.memory_space<vmem>>, vector<1x4x256xf32>
    %62 = vector.shape_cast %61 : vector<1x4x256xf32> to vector<4x256xf32>
    %63 = vector.shape_cast %60 : vector<4x256xf32> to vector<1x4x256xf32>
    tpu.vector_store %arg3[%c0_33, %c0_34, %c1280], %63 {strides = array<i32>} : memref<1x4x2304xf32, #tpu.memory_space<vmem>>, vector<1x4x256xf32>,
    %c0_35 = arith.constant 0 : index
    %c143 = arith.constant 143 : index
    %64 = vector.load %arg4[%c0_35, %c143] : memref<4x512xf32, #tpu.memory_space<vmem>>, vector<4x256xf32>
    %c0_i32_36 = arith.constant 0 : i32
    %65 = arith.sitofp %c0_i32_36 : i32 to f32
    %66 = vector.broadcast %65 : f32 to vector<4x256xf32>
    %67 = arith.select %25, %64, %66 : vector<4x256xi1>, vector<4x256xf32>
    %c0_37 = arith.constant 0 : index
    %c0_38 = arith.constant 0 : index
    %c1536 = arith.constant 1536 : index
    %68 = vector.load %arg3[%c0_37, %c0_38, %c1536] : memref<1x4x2304xf32, #tpu.memory_space<vmem>>, vector<1x4x256xf32>
    %69 = vector.shape_cast %68 : vector<1x4x256xf32> to vector<4x256xf32>
    %70 = vector.shape_cast %67 : vector<4x256xf32> to vector<1x4x256xf32>
    tpu.vector_store %arg3[%c0_37, %c0_38, %c1536], %70 {strides = array<i32>} : memref<1x4x2304xf32, #tpu.memory_space<vmem>>, vector<1x4x256xf32>,
    %c0_39 = arith.constant 0 : index
    %c144 = arith.constant 144 : index
    %71 = vector.load %arg4[%c0_39, %c144] : memref<4x512xf32, #tpu.memory_space<vmem>>, vector<4x256xf32>
    %c0_40 = arith.constant 0 : index
    %c0_41 = arith.constant 0 : index
    %c1792 = arith.constant 1792 : index
    %72 = vector.load %arg3[%c0_40, %c0_41, %c1792] : memref<1x4x2304xf32, #tpu.memory_space<vmem>>, vector<1x4x256xf32>
    %73 = vector.shape_cast %72 : vector<1x4x256xf32> to vector<4x256xf32>
    %74 = vector.shape_cast %71 : vector<4x256xf32> to vector<1x4x256xf32>
    tpu.vector_store %arg3[%c0_40, %c0_41, %c1792], %74 {strides = array<i32>} : memref<1x4x2304xf32, #tpu.memory_space<vmem>>, vector<1x4x256xf32>,
    %c0_42 = arith.constant 0 : index
    %c145 = arith.constant 145 : index
    %75 = vector.load %arg4[%c0_42, %c145] : memref<4x512xf32, #tpu.memory_space<vmem>>, vector<4x256xf32>
    %c0_i32_43 = arith.constant 0 : i32
    %76 = arith.sitofp %c0_i32_43 : i32 to f32
    %77 = vector.broadcast %76 : f32 to vector<4x256xf32>
    %78 = arith.select %27, %75, %77 : vector<4x256xi1>, vector<4x256xf32>
    %c0_44 = arith.constant 0 : index
    %c0_45 = arith.constant 0 : index
    %c2048 = arith.constant 2048 : index
    %79 = vector.load %arg3[%c0_44, %c0_45, %c2048] : memref<1x4x2304xf32, #tpu.memory_space<vmem>>, vector<1x4x256xf32>
    %80 = vector.shape_cast %79 : vector<1x4x256xf32> to vector<4x256xf32>
    %81 = vector.shape_cast %78 : vector<4x256xf32> to vector<1x4x256xf32>
    tpu.vector_store %arg3[%c0_44, %c0_45, %c2048], %81 {strides = array<i32>} : memref<1x4x2304xf32, #tpu.memory_space<vmem>>, vector<1x4x256xf32>,
    return
  }
  func.func @transform_0(%arg0: i32, %arg1: i32) -> (i32, i32, i32) {
    %c0_i32 = arith.constant 0 : i32
    %c0_i32_0 = arith.constant 0 : i32
    return %arg0, %arg1, %c0_i32 : i32, i32, i32
  }
  func.func @transform_1(%arg0: i32, %arg1: i32) -> (i32, i32, i32) {
    %c0_i32 = arith.constant 0 : i32
    %c0_i32_0 = arith.constant 0 : i32
    return %arg0, %arg1, %c0_i32 : i32, i32, i32
  }
}

</mosaic_0001>

<llo_original>
// kernel: tpu_custom_call.1
$region0: #{tpu_custom_call.1}
  #allocation0 [shape = 'u32[]', space=smem, size = 0x4, offset = 0x4, fixed_abs, tag = 'smem constant byte address 0x4 - core index']
  #allocation1 [shape = 'u32[144,128]{1,0:T(1,128)}', space=vmem, size = 0x12000, scoped, tag = 'internal scratch']
  #allocation2 [shape = 'f32[4,512]{1,0:T(4,128)}', space=vmem, size = 0x2000, scoped, tag = 'scratch operand']
  %s0 = inlined_call_operand.hbm [shape: f32[2,4,256], index: 0, kind: input, shape index: {}]
  %s1 = inlined_call_operand.hbm [shape: f32[2,4,2304], index: 1, kind: output, shape index: {}]
  %s2 = sld [smem:[#allocation0]]
  $region41: #{tpu_custom_call.1} parent=0
    _
  %s4 = ssub.s32 1, %s2
  %s5 = scalar_select 0, %s4, %s2
  $region1: #{tpu_custom_call.1} parent=0
    #allocation3 [shape = 'u8[8192]{0}', space=vmem, size = 0x2000, scoped, tag = 'input window, operand 0']
    #allocation4 [shape = 's32[2]{0}', space=sflag, size = 0x8, scoped, tag = 'scoped memory for tpu_custom_call.1']
    #allocation5 [shape = 's32[2]{0}', space=sflag, size = 0x8, scoped, tag = 'scoped memory for tpu_custom_call.1']
    #allocation6 [shape = 'u8[73728]{0}', space=vmem, size = 0x12000, scoped, tag = 'output window, operand 0']
    %6 = vsyncpa [#allocation4], 0
    %s7 = scalar_lea.sflag [#allocation4], 1
    %8 = vsyncpa %s7, 0
    %9 = vsyncpa [#allocation5], 0
    %s10 = scalar_lea.sflag [#allocation5], 1
    %11 = vsyncpa %s10, 0
    loop: start=0, step=1, limit=4
    $region2: #{tpu_custom_call.1} parent=1 // loop_pre_header
      _
    $region3: #{tpu_custom_call.1} parent=1 // loop_header
      %s13 = sphi 0, %s17
      %p14 = scmp.ge.s32.totalorder %s13, 4
      %s20 = sphi 0, %s32
      %s21 = sphi 0, %s28
      %s22 = sphi 0, %s20
      %s23 = sphi 0, %s21
      %s24 = sphi 0, %s22
      %s25 = sphi 0, %s23
      %s37 = sphi 0, %s39
      %s40 = sphi 0, %s37
      %s41 = sphi 0, %s40
      %s57 = sphi 0, %s41
      %s65 = sphi 0, %s67
      %s68 = sphi 0, %s65
      %s69 = sphi 0, %s68
      %s85 = sphi 0, %s69
    $region4: #{tpu_custom_call.1} parent=1 // loop_header_branch
      %16 = sbr.rel (%p14) target = $region8
    $region5: #{tpu_custom_call.1} parent=1 // loop_body
      %s18 = ssub.s32 %s13, 1
      %s19 = ssub.s32 %s13, 2
      %s26 = sadd.s32 1, %s21
      %p27 = scmp.ge.s32.totalorder %s26, 1
      %s28 = scalar_select %p27, 0, %s26
      %s29 = sadd.s32 1, %s20
      %s30 = scalar_select %p27, %s29, %s20
      %p31 = scmp.ge.s32.totalorder %s30, 2
      %s32 = scalar_select %p31, 0, %s30
      %s33 = ssub.s32 %s20, %s32
      %s34 = ssub.s32 %s21, %s28
      %s35 = sor.u32 %s33, %s34
      %p36 = scmp.eq.s32.totalorder %s35, 0
      %s38 = sadd.s32 %s37, 1
      %s39 = scalar_select %p36, %s37, %s38
      %p42 = pneg %p36
      %p43 = scmp.eq.s32.totalorder %s13, 1
      %p44 = por %p42, %p43
      %p45 = scmp.ne.s32.totalorder %s37, %s40
      %p46 = scmp.eq.s32.totalorder %s13, 0
      %p47 = por %p45, %p46
      %p48 = scmp.ne.s32.totalorder %s37, %s40
      %p49 = scmp.eq.s32.totalorder %s18, 1
      %p50 = por %p48, %p49
      %p51 = scmp.ne.s32.totalorder %s40, %s41
      %p52 = scmp.eq.s32.totalorder %s18, 0
      %p53 = por %p51, %p52
      %p54 = scmp.ne.s32.totalorder %s40, %s41
      %p55 = scmp.eq.s32.totalorder %s19, 1
      %p56 = por %p54, %p55
      %p58 = scmp.ne.s32.totalorder %s41, %s57
      %p59 = scmp.eq.s32.totalorder %s19, 0
      %p60 = por %p58, %p59
      %s61 = ssub.s32 %s20, %s32
      %s62 = ssub.s32 %s21, %s28
      %s63 = sor.u32 %s61, %s62
      %p64 = scmp.eq.s32.totalorder %s63, 0
      %s66 = sadd.s32 %s65, 1
      %s67 = scalar_select %p64, %s65, %s66
      %p70 = pneg %p64
      %p71 = scmp.eq.s32.totalorder %s13, 1
      %p72 = por %p70, %p71
      %p73 = scmp.ne.s32.totalorder %s65, %s68
      %p74 = scmp.eq.s32.totalorder %s13, 0
      %p75 = por %p73, %p74
      %p76 = scmp.ne.s32.totalorder %s65, %s68
      %p77 = scmp.eq.s32.totalorder %s18, 1
      %p78 = por %p76, %p77
      %p79 = scmp.ne.s32.totalorder %s68, %s69
      %p80 = scmp.eq.s32.totalorder %s18, 0
      %p81 = por %p79, %p80
      %p82 = scmp.ne.s32.totalorder %s68, %s69
      %p83 = scmp.eq.s32.totalorder %s19, 1
      %p84 = por %p82, %p83
      %p86 = scmp.ne.s32.totalorder %s69, %s85
      %p87 = scmp.eq.s32.totalorder %s19, 0
      %p88 = por %p86, %p87
      %p89 = scmp.le.s32.totalorder 1, %s13
      %p90 = scmp.lt.s32.totalorder %s13, 3
      %p91 = pnand %p89, %p90
      %p92 = pneg %p91
      // Predicated region
      $region9: #{tpu_custom_call.1} parent=5 // pred_check
        _
      $region10: #{tpu_custom_call.1} parent=5 // pred_check_branch
        %94 = sbr.rel (%p91) target = $region12
      $region11: #{tpu_custom_call.1} parent=5 // pred_region
        %s95 = ssub.s32 %s13, 1
      $region12: #{tpu_custom_call.1} parent=5 // pred_fallthru
        _
      %p96 = scmp.lt.s32.totalorder %s13, 2
      // Predicated region
      $region13: #{tpu_custom_call.1} parent=5 // pred_check
        %p97 = pneg %p96
      $region14: #{tpu_custom_call.1} parent=5 // pred_check_branch
        %99 = sbr.rel (%p97) target = $region16
      $region15: #{tpu_custom_call.1} parent=5 // pred_region
        // Predicated region
        $region17: #{tpu_custom_call.1} parent=15 // pred_check
          %p100 = pneg %p47
        $region18: #{tpu_custom_call.1} parent=15 // pred_check_branch
          %102 = sbr.rel (%p100) target = $region20
        $region19: #{tpu_custom_call.1} parent=15 // pred_region
          %s103 = sand.u32 %s37, 1
          %s104 = scalar_lea.sflag [#allocation4], %s103
          %s105 = sand.u32 %s37, 1
          %s106 = smul.addr %s105, 8
          %s107 = scalar_lea.vmem [#allocation3], %s106
          %s109 = ssub.s32 128, 128
          %110 = vsyncadd %s104, %s109
          %s111 = smul.addr %s21, 2
          %s112 = smul.addr %s20, 2
          %s113 = sadd.s32 %s111, %s112
          %s114 = smul.addr %s113, 64
          %s115 = scalar_lea.hbm %s0, %s114
          %s117 = sshll.u32 %s107, 4
          %s118 = int_to_ptr.vmem [resolvable:$true] %s117
          %120 = dma.hbm_to_vmem [thread:$0]  %s115, 128, %s118, %s104
        $region20: #{tpu_custom_call.1} parent=15 // pred_fallthru
          _
      $region16: #{tpu_custom_call.1} parent=5 // pred_fallthru
        _
      %p121 = scmp.le.s32.totalorder 1, %s13
      %p122 = scmp.lt.s32.totalorder %s13, 3
      %p123 = pnand %p121, %p122
      %p124 = pneg %p123
      // Predicated region
      $region21: #{tpu_custom_call.1} parent=5 // pred_check
        _
      $region22: #{tpu_custom_call.1} parent=5 // pred_check_branch
        %126 = sbr.rel (%p123) target = $region24
      $region23: #{tpu_custom_call.1} parent=5 // pred_region
        %s127 = ssub.s32 %s13, 1
        %s128 = sand.u32 %s40, 1
        %s129 = scalar_lea.sflag [#allocation4], %s128
        %s130 = sand.u32 %s40, 1
        %s131 = smul.addr %s130, 8
        %s132 = scalar_lea.vmem [#allocation3], %s131
        // Predicated region
        $region25: #{tpu_custom_call.1} parent=23 // pred_check
          %p133 = pneg %p53
        $region26: #{tpu_custom_call.1} parent=23 // pred_check_branch
          %135 = sbr.rel (%p133) target = $region28
        $region27: #{tpu_custom_call.1} parent=23 // pred_region
          %136 = dma.done %s129, 128
        $region28: #{tpu_custom_call.1} parent=23 // pred_fallthru
          _
        %s137 = sand.u32 %s40, 1
        %s138 = scalar_lea.sflag [#allocation4], %s137
        %s139 = sand.u32 %s40, 1
        %s140 = smul.addr %s139, 8
        %s141 = scalar_lea.vmem [#allocation3], %s140
        %p142 = pneg %p53
        %p143 = pneg %p50
        %p144 = pneg %p81
        %p145 = pneg %p78
        %s146 = sand.u32 %s68, 1
        %s147 = scalar_lea.sflag [#allocation5], %s146
        %s148 = sand.u32 %s68, 1
        %s149 = smul.addr %s148, 72
        %s150 = scalar_lea.vmem [#allocation6], %s149
        %151 = vst [vmem:[#allocation2] sm:$0xf] 0.0
        %152 = vst [vmem:[#allocation2 + $0xc] sm:$0xf] 0.0
        %v153 = vld [vmem:[%s132] sm:$0xff]
        %154 = vst [vmem:[#allocation2 + $0x4] sm:$0xff] %v153
        %v155 = vlaneseq
        %v156 = vand.u32 %v155, 127
        %v157 = vadd.s32 %v156, 128
        %vm158 = vcmp.lt.s32.totalorder %v156, 0
        %v159 = vsub.s32 0, %v156
        %v160 = vsel %vm158, %v159, %v156
        %v161 = vshrl.u32 %v160, 4
        %v162 = vand.u32 %v160, 15
        %v163 = vsub.s32 0, %v162
        %v164 = vsel %vm158, %v163, %v162
        %vm165 = vcmp.lt.s32.totalorder %v157, 0
        %v166 = vsub.s32 0, %v157
        %v167 = vsel %vm165, %v166, %v157
        %v168 = vshrl.u32 %v167, 4
        %v169 = vand.u32 %v167, 15
        %v170 = vsub.s32 0, %v169
        %v171 = vsel %vm165, %v170, %v169
        %vm172 = vcmp.ne.s32.totalorder %v164, 0
        %vm173 = vcmp.ne.s32.totalorder %v171, 0
        %vm174 = vcmp.lt.s32.totalorder %v164, 0
        %vm175 = vcmp.lt.s32.totalorder %v171, 0
        %vm176 = vmand %vm174, %vm172
        %vm177 = vmand %vm175, %vm173
        %v178 = vadd.s32 %v164, 16
        %v179 = vadd.s32 %v171, 16
        %v180 = vsel %vm176, %v178, %v164
        %v181 = vsel %vm177, %v179, %v171
        %vm182 = vcmp.ge.s32.totalorder %v180, 1
        %vm183 = vcmp.ge.s32.totalorder %v181, 1
        %vm184 = vcmp.lt.s32.totalorder %v180, 15
        %vm185 = vcmp.lt.s32.totalorder %v181, 15
        %v186 = vld [vmem:[#allocation2] sm:$0xff]
        %v187 = vld [vmem:[#allocation2 + $0x8] sm:$0xf]
        %v190 = vcombine.high %v186, %v186
        %191 = vrot.lane.b32.xlu0 %v186, 17
        %v192 = vpop.permute.xlu0 %191
        %193 = vrot.lane.b32.xlu0 %v190, 17
        %v194 = vpop.permute.xlu0 %193
        %195 = vrot.lane.b32.xlu0 %v187, 17
        %v196 = vpop.permute.xlu0 %195
        %vm197 = vcmask 138240
        %v198 = vsel %vm197, %v192, %v194
        %v199 = vsel %vm197, %v194, %v196
        %v202 = vsel %vm182, %v198, 0.0
        %v203 = vsel %vm183, %v199, 0.0
        %v206 = vcombine.low %v202, %v203
        %208 = vst [vmem:[%s150] sm:$0xff] %v206
        %v209 = vld [vmem:[#allocation2] sm:$0xff]
        %v210 = vld [vmem:[#allocation2 + $0x8] sm:$0xf]
        %213 = vrot.lane.b32.xlu0 %v209, 16
        %v214 = vpop.permute.xlu0 %213
        %215 = vrot.lane.b32.xlu0 %v210, 16
        %v216 = vpop.permute.xlu0 %215
        %v217 = vrot.slane %v214, 4
        %v218 = vrot.slane %v216, 4
        %vm219 = vcmask 1043456
        %v220 = vsel %vm219, %v217, %v218
        %vm221 = vcmask 130048
        %v222 = vsel %vm221, %v214, %v220
        %224 = vst [vmem:[%s150 + $0x8] sm:$0xff] %v222
        %v225 = vld [vmem:[#allocation2] sm:$0xff]
        %v226 = vld [vmem:[#allocation2 + $0x8] sm:$0xf]
        %v229 = vcombine.high %v225, %v225
        %230 = vrot.lane.b32.xlu0 %v225, 15
        %v231 = vpop.permute.xlu0 %230
        %232 = vrot.lane.b32.xlu0 %v229, 15
        %v233 = vpop.permute.xlu0 %232
        %234 = vrot.lane.b32.xlu0 %v226, 15
        %v235 = vpop.permute.xlu0 %234
        %vm236 = vcmask 121856
        %v237 = vsel %vm236, %v231, %v233
        %v238 = vsel %vm236, %v233, %v235
        %v241 = vsel %vm184, %v237, 0.0
        %v242 = vsel %vm185, %v238, 0.0
        %v245 = vcombine.low %v241, %v242
        %247 = vst [vmem:[%s150 + $0x10] sm:$0xff] %v245
        %v248 = vld [vmem:[#allocation2] sm:$0xff]
        %v249 = vld [vmem:[#allocation2 + $0x8] sm:$0xf]
        %v252 = vcombine.high %v248, %v248
        %253 = vrot.lane.b32.xlu0 %v248, 1
        %v254 = vpop.permute.xlu0 %253
        %255 = vrot.lane.b32.xlu0 %v252, 1
        %v256 = vpop.permute.xlu0 %255
        %257 = vrot.lane.b32.xlu0 %v249, 1
        %v258 = vpop.permute.xlu0 %257
        %vm259 = vcmask 7168
        %v260 = vsel %vm259, %v254, %v256
        %v261 = vsel %vm259, %v256, %v258
        %v264 = vsel %vm182, %v260, 0.0
        %v265 = vsel %vm183, %v261, 0.0
        %v268 = vcombine.low %v264, %v265
        %270 = vst [vmem:[%s150 + $0x18] sm:$0xff] %v268
        %v271 = vld [vmem:[#allocation2 + $0x4] sm:$0xff]
        %272 = vst [vmem:[%s150 + $0x20] sm:$0xff] %v271
        %v273 = vld [vmem:[#allocation2 + $0x4] sm:$0xff]
        %v274 = vld [vmem:[#allocation2 + $0xc] sm:$0xf]
        %v277 = vcombine.high %v273, %v273
        %278 = vrot.lane.b32.xlu0 %v273, 127
        %v279 = vpop.permute.xlu0 %278
        %280 = vrot.lane.b32.xlu0 %v277, 127
        %v281 = vpop.permute.xlu0 %280
        %282 = vrot.lane.b32.xlu0 %v274, 127
        %v283 = vpop.permute.xlu0 %282
        %vm284 = vcmask 1039360
        %v285 = vsel %vm284, %v279, %v281
        %v286 = vsel %vm284, %v281, %v283
        %v289 = vsel %vm184, %v285, 0.0
        %v290 = vsel %vm185, %v286, 0.0
        %v293 = vcombine.low %v289, %v290
        %295 = vst [vmem:[%s150 + $0x28] sm:$0xff] %v293
        %v296 = vld [vmem:[#allocation2 + $0x4] sm:$0xff]
        %v297 = vld [vmem:[#allocation2 + $0xc] sm:$0xf]
        %v300 = vcombine.high %v296, %v296
        %301 = vrot.lane.b32.xlu0 %v296, 113
        %v302 = vpop.permute.xlu0 %301
        %303 = vrot.lane.b32.xlu0 %v300, 113
        %v304 = vpop.permute.xlu0 %303
        %305 = vrot.lane.b32.xlu0 %v297, 113
        %v306 = vpop.permute.xlu0 %305
        %vm307 = vcmask 924672
        %v308 = vsel %vm307, %v302, %v304
        %v309 = vsel %vm307, %v304, %v306
        %v312 = vsel %vm182, %v308, 0.0
        %v313 = vsel %vm183, %v309, 0.0
        %v316 = vcombine.low %v312, %v313
        %318 = vst [vmem:[%s150 + $0x30] sm:$0xff] %v316
        %v319 = vld [vmem:[#allocation2 + $0x4] sm:$0xff]
        %v320 = vld [vmem:[#allocation2 + $0xc] sm:$0xf]
        %323 = vrot.lane.b32.xlu0 %v319, 112
        %v324 = vpop.permute.xlu0 %323
        %325 = vrot.lane.b32.xlu0 %v320, 112
        %v326 = vpop.permute.xlu0 %325
        %v327 = vrot.slane %v324, 4
        %v328 = vrot.slane %v326, 4
        %v329 = vsel %vm219, %v327, %v328
        %vm330 = vcmask 916480
        %v331 = vsel %vm330, %v324, %v329
        %333 = vst [vmem:[%s150 + $0x38] sm:$0xff] %v331
        %v334 = vld [vmem:[#allocation2 + $0x4] sm:$0xff]
        %v335 = vld [vmem:[#allocation2 + $0xc] sm:$0xf]
        %v338 = vcombine.high %v334, %v334
        %339 = vrot.lane.b32.xlu0 %v334, 111
        %v340 = vpop.permute.xlu0 %339
        %341 = vrot.lane.b32.xlu0 %v338, 111
        %v342 = vpop.permute.xlu0 %341
        %343 = vrot.lane.b32.xlu0 %v335, 111
        %v344 = vpop.permute.xlu0 %343
        %vm345 = vcmask 908288
        %v346 = vsel %vm345, %v340, %v342
        %v347 = vsel %vm345, %v342, %v344
        %v350 = vsel %vm184, %v346, 0.0
        %v351 = vsel %vm185, %v347, 0.0
        %v354 = vcombine.low %v350, %v351
        %356 = vst [vmem:[%s150 + $0x40] sm:$0xff] %v354
        %s357 = sand.u32 %s68, 1
        %s358 = scalar_lea.sflag [#allocation5], %s357
        %s359 = sand.u32 %s68, 1
        %s360 = smul.addr %s359, 72
        %s361 = scalar_lea.vmem [#allocation6], %s360
        // Predicated region
        $region29: #{tpu_custom_call.1} parent=23 // pred_check
          %p362 = pneg %p78
        $region30: #{tpu_custom_call.1} parent=23 // pred_check_branch
          %364 = sbr.rel (%p362) target = $region32
        $region31: #{tpu_custom_call.1} parent=23 // pred_region
          %s366 = ssub.s32 1152, 1152
          %367 = vsyncadd %s358, %s366
          %s368 = smul.addr %s23, 18
          %s369 = smul.addr %s22, 18
          %s370 = sadd.s32 %s368, %s369
          %s371 = smul.addr %s370, 64
          %s372 = scalar_lea.hbm %s1, %s371
          %s374 = sshll.u32 %s361, 4
          %s375 = int_to_ptr.vmem [resolvable:$true] %s374
          %377 = dma.vmem_to_hbm [thread:$0]  %s375, 1152, %s372, %s358
        $region32: #{tpu_custom_call.1} parent=23 // pred_fallthru
          _
      $region24: #{tpu_custom_call.1} parent=5 // pred_fallthru
        _
      %p378 = scmp.le.s32.totalorder 2, %s13
      // Predicated region
      $region33: #{tpu_custom_call.1} parent=5 // pred_check
        %p379 = pneg %p378
      $region34: #{tpu_custom_call.1} parent=5 // pred_check_branch
        %381 = sbr.rel (%p379) target = $region36
      $region35: #{tpu_custom_call.1} parent=5 // pred_region
        %s382 = ssub.s32 %s13, 2
        // Predicated region
        $region37: #{tpu_custom_call.1} parent=35 // pred_check
          %p383 = pneg %p84
        $region38: #{tpu_custom_call.1} parent=35 // pred_check_branch
          %385 = sbr.rel (%p383) target = $region40
        $region39: #{tpu_custom_call.1} parent=35 // pred_region
          %s386 = sand.u32 %s69, 1
          %s387 = scalar_lea.sflag [#allocation5], %s386
          %s388 = sand.u32 %s69, 1
          %s389 = smul.addr %s388, 72
          %s390 = scalar_lea.vmem [#allocation6], %s389
          %391 = dma.done %s387, 1152
        $region40: #{tpu_custom_call.1} parent=35 // pred_fallthru
          _
      $region36: #{tpu_custom_call.1} parent=5 // pred_fallthru
        _
    $region6: #{tpu_custom_call.1} parent=1 // loop_footer
      %s17 = sadd.s32 1, %s13
    $region7: #{tpu_custom_call.1} parent=1 // loop_footer_branch
      %12 = sbr.rel target = $region3
    $region8: #{tpu_custom_call.1} parent=1 // loop_exit
      _
    %392 = vsyncpa [#allocation4], 1
    %s393 = scalar_lea.sflag [#allocation4], 1
    %394 = vsyncpa %s393, 1
    %395 = vsyncpa [#allocation5], 1
    %s396 = scalar_lea.sflag [#allocation5], 1
    %397 = vsyncpa %s396, 1

</llo_original>
